<compile_context>
chip_gen: v5e
topology: v5e:2x2
jax: 0.10.0
libtpu: 0.0.40
codegen_flags: <defaults>
</compile_context>

<pallas_src>
import jax
import jax.numpy as jnp
from jax import lax
from jax.experimental import pallas as pl
from jax.experimental.pallas import tpu as pltpu


# Padded points: squared distance to any real point is ~3e16 (never wins a
# min) while every intermediate (s2, t2, 2*s.t) stays far inside f32 range.
_PAD_COORD = 1.0e8


def _round_up(x: int, m: int) -> int:
    return ((x + m - 1) // m) * m


def _make_chamfer_kernel(N, M, TN, SW, nN, n_strips):
    inv_n = 1.0 / N
    inv_m = 1.0 / M
    M_pad = n_strips * SW
    mask_rows = (N % TN) != 0      # static: last N tile contains padded rows?
    mask_cols = (M_pad != M)       # static: padded target columns exist?

    def kernel(src_ref, tgt_ref, out_ref, colmin_ref, srcsum_ref):
        ni = pl.program_id(1)

        # ---- per-batch init (first source tile of each batch element) -----
        @pl.when(ni == 0)
        def _():
            srcsum_ref[...] = jnp.zeros_like(srcsum_ref)
            colmin_ref[...] = jnp.full(colmin_ref.shape, jnp.inf,
                                       colmin_ref.dtype)

        s = src_ref[0]                                     # (TN, 8) point-major
        s2 = jnp.sum(s * s, axis=1, keepdims=True)         # (TN, 1)
        s_m2 = s * (-2.0)                                   # fold -2 into LHS

        # ---- walk the whole (resident) target in lane strips ---------------
        def strip_body(mi, row_acc):
            m0 = pl.multiple_of(mi * SW, 128)
            t = tgt_ref[0, :, pl.ds(m0, SW)]                # (8, SW) chan-major
            t2 = jnp.sum(t * t, axis=0, keepdims=True)      # (1, SW)
            # cross term on the idle MXU: st2 = -2 * s . t
            st2 = jnp.dot(s_m2, t,
                          preferred_element_type=jnp.float32,
                          precision=jax.lax.Precision.HIGHEST)   # (TN, SW)
            dist = (s2 + t2) + st2                          # (TN, SW), never stored

            # target -> source: column-min over this source tile's rows
            strip_cmin = jnp.min(dist, axis=0, keepdims=True)        # (1, SW)
            prev = colmin_ref[:, pl.ds(m0, SW)]
            colmin_ref[:, pl.ds(m0, SW)] = jnp.minimum(prev, strip_cmin)

            # source -> target: elementwise running min; lane-reduce once at end
            return jnp.minimum(row_acc, dist)

        row_acc = lax.fori_loop(0, n_strips, strip_body,
                                jnp.full((TN, SW), jnp.inf, jnp.float32))

        # one lane-reduce (XLU) per source tile, clamp cancellation at 0
        row_min = jnp.maximum(jnp.min(row_acc, axis=1, keepdims=True), 0.0)
        if mask_rows:
            rows = ni * TN + lax.broadcasted_iota(jnp.int32, (TN, 1), 0)
            row_min = jnp.where(rows < N, row_min, 0.0)
        srcsum_ref[...] = srcsum_ref[...] + jnp.sum(row_min, axis=0,
                                                    keepdims=True)

        # ---- finalize after the last source tile of this batch -------------
        @pl.when(ni == nN - 1)
        def _():
            cm = jnp.maximum(colmin_ref[...], 0.0)           # (1, M_pad)
            if mask_cols:
                cols = lax.broadcasted_iota(jnp.int32, cm.shape, 1)
                cm = jnp.where(cols < M, cm, 0.0)
            tgt_sum = jnp.sum(cm, axis=1, keepdims=True)     # (1, 1)
            result = srcsum_ref[...] * inv_n + tgt_sum * inv_m
            out_ref[...] = result.reshape(1, 1, 1)

    return kernel


def chamfer_distance(source_points: jnp.ndarray,
                     target_points: jnp.ndarray,
                     *, tn: int = 256, sw: int = 256) -> jnp.ndarray:
    """Chamfer distance; returns (B,) float32, matching ChamferDistanceLoss."""
    assert source_points.ndim == 3 and target_points.ndim == 3
    assert source_points.shape[2] == 3 and target_points.shape[2] == 3
    B, N, _ = source_points.shape
    Bt, M, _ = target_points.shape
    assert B == Bt and N > 0 and M > 0

    src = source_points.astype(jnp.float32)
    tgt = target_points.astype(jnp.float32)

    # TN on sublanes (multiple of 8); SW is the in-kernel lane-strip width
    # (multiple of 128).  The whole (channel-major) target is VMEM-resident.
    TN = min(tn, _round_up(N, 8))
    SW = min(sw, _round_up(M, 128))
    N_pad = _round_up(N, TN)
    M_pad = _round_up(M, SW)
    nN = N_pad // TN
    n_strips = M_pad // SW

    # Pad points with a far-away coordinate (never wins a min; also masked out
    # of the means), then zero-pad the channel dim 3 -> 8 for the MXU.
    if N_pad != N:
        src = jnp.pad(src, ((0, 0), (0, N_pad - N), (0, 0)),
                      constant_values=_PAD_COORD)
    if M_pad != M:
        tgt = jnp.pad(tgt, ((0, 0), (0, M_pad - M), (0, 0)),
                      constant_values=_PAD_COORD)
    src = jnp.pad(src, ((0, 0), (0, 0), (0, 5)))                # (B, N_pad, 8)
    tgt_cm = jnp.pad(jnp.transpose(tgt, (0, 2, 1)),
                     ((0, 0), (0, 5), (0, 0)))                  # (B, 8, M_pad)

    kernel = _make_chamfer_kernel(N, M, TN, SW, nN, n_strips)

    # VMEM budget: double-buffered source tile (lane-padded to 128), double-
    # buffered resident target, colmin scratch (sublane-padded), strip/carry
    # working set, plus headroom.  Never below the default scoped limit; capped
    # at 64 MiB so the same configuration also fits v7x.
    est = (2 * TN * 128 * 4 + 2 * 8 * M_pad * 4 + 8 * M_pad * 4
           + 2 * TN * SW * 4 + (2 << 20))
    vmem_limit = int(min(max(est, 32 * 1024 * 1024), 64 * 1024 * 1024))

    out = pl.pallas_call(
        kernel,
        out_shape=jax.ShapeDtypeStruct((B, 1, 1), jnp.float32),
        grid_spec=pltpu.PrefetchScalarGridSpec(
            num_scalar_prefetch=0,
            grid=(B, nN),
            in_specs=[
                pl.BlockSpec((1, TN, 8), lambda b, ni: (b, ni, 0)),
                # constant block index over ni -> DMA'd once per batch element
                pl.BlockSpec((1, 8, M_pad), lambda b, ni: (b, 0, 0)),
            ],
            out_specs=pl.BlockSpec((1, 1, 1), lambda b, ni: (b, 0, 0)),
            scratch_shapes=[
                pltpu.VMEM((1, M_pad), jnp.float32),   # running col-min (all M)
                pltpu.VMEM((1, 1), jnp.float32),       # running sum of row-mins
            ],
        ),
        compiler_params=pltpu.CompilerParams(
            dimension_semantics=("parallel", "arbitrary"),
            vmem_limit_bytes=vmem_limit,
        ),
    )(src, tgt_cm)

    return out.reshape(B)


if __name__ == "__main__":
    key = jax.random.PRNGKey(0)
    k_src, k_tgt = jax.random.split(key)

    def reference(src, tgt):
        diff = src[:, :, None, :] - tgt[:, None, :, :]
        d = jnp.sum(diff * diff, axis=-1)
        return (jnp.mean(jnp.min(d, axis=2), axis=1)
                + jnp.mean(jnp.min(d, axis=1), axis=1))

    # Small smoke test (single tile / single strip per batch element).
    B, N, M = 2, 8, 16
    source = jax.random.normal(k_src, (B, N, 3), dtype=jnp.float32)
    target = jax.random.normal(k_tgt, (B, M, 3), dtype=jnp.float32)
    out = jax.block_until_ready(chamfer_distance(source, target))
    ref = reference(source, target)
    assert out.shape == (B,)
    assert jnp.allclose(out, ref, atol=5e-5, rtol=1e-4)

    # Multi-tile / multi-strip path (exercises streaming min accumulators,
    # the in-kernel M loop and the padded-row/column masks).
    N2, M2 = 700, 1300
    src2 = jax.random.normal(k_src, (B, N2, 3), dtype=jnp.float32)
    tgt2 = jax.random.normal(k_tgt, (B, M2, 3), dtype=jnp.float32)
    out2 = jax.block_until_ready(chamfer_distance(src2, tgt2))
    ref2 = reference(src2, tgt2)
    assert jnp.allclose(out2, ref2, atol=5e-5, rtol=1e-4)

    print("KERNEL_OK")
</pallas_src>

<mosaic_0001>
module attributes {stable_mosaic.version = 11 : i64} {
  func.func @kernel(%arg0: i32, %arg1: i32, %arg2: memref<1x8x8xf32, #tpu.memory_space<vmem>>, %arg3: memref<1x8x128xf32, #tpu.memory_space<vmem>>, %arg4: memref<1x1x1xf32, #tpu.memory_space<vmem>>, %arg5: memref<1x128xf32, #tpu.memory_space<vmem>>, %arg6: memref<1x1xf32, #tpu.memory_space<vmem>>) attributes {dimension_semantics = [#tpu.dimension_semantics<parallel>, #tpu.dimension_semantics<arbitrary>], iteration_bounds = array<i64: 2, 1>, scalar_prefetch = 0 : i64, scratch_operands = 2 : i64, tpu.core_type = #tpu.core_type<tc>, window_params = [{transform_indices = @transform_0, window_bounds = array<i64: 1, 8, 8>}, {transform_indices = @transform_1, window_bounds = array<i64: 1, 8, 128>}, {transform_indices = @transform_2, window_bounds = array<i64: 1, 1, 1>}]} {
    %c0_i32 = arith.constant 0 : i32
    %0 = arith.cmpi eq, %arg1, %c0_i32 : i32
    %1 = arith.extui %0 : i1 to i32
    %c0_i32_0 = arith.constant 0 : i32
    %2 = arith.cmpi ne, %1, %c0_i32_0 : i32
    scf.if %2 {
      %cst_22 = arith.constant 0.000000e+00 : f32
      %44 = vector.broadcast %cst_22 : f32 to vector<1x1xf32>
      %c0_23 = arith.constant 0 : index
      %c0_24 = arith.constant 0 : index
      %45 = vector.load %arg6[%c0_23, %c0_24] : memref<1x1xf32, #tpu.memory_space<vmem>>, vector<1x1xf32>
      tpu.vector_store %arg6[%c0_23, %c0_24], %44 {strides = array<i32>} : memref<1x1xf32, #tpu.memory_space<vmem>>, vector<1x1xf32>,
      %cst_25 = arith.constant 0x7F800000 : f32
      %46 = vector.broadcast %cst_25 : f32 to vector<1x128xf32>
      %c0_26 = arith.constant 0 : index
      %c0_27 = arith.constant 0 : index
      %47 = vector.load %arg5[%c0_26, %c0_27] : memref<1x128xf32, #tpu.memory_space<vmem>>, vector<1x128xf32>
      tpu.vector_store %arg5[%c0_26, %c0_27], %46 {strides = array<i32>} : memref<1x128xf32, #tpu.memory_space<vmem>>, vector<1x128xf32>,
    } else {
    }
    %c0 = arith.constant 0 : index
    %c0_1 = arith.constant 0 : index
    %c0_2 = arith.constant 0 : index
    %3 = vector.load %arg2[%c0, %c0_1, %c0_2] : memref<1x8x8xf32, #tpu.memory_space<vmem>>, vector<1x8x8xf32>
    %4 = vector.shape_cast %3 : vector<1x8x8xf32> to vector<8x8xf32>
    %5 = arith.mulf %4, %4 : vector<8x8xf32>
    %cst = arith.constant dense<0.000000e+00> : vector<8xf32>
    %6 = vector.multi_reduction <add>, %5, %cst [1] : vector<8x8xf32> to vector<8xf32>
    %7 = vector.shape_cast %6 : vector<8xf32> to vector<8x1xf32>
    %cst_3 = arith.constant -2.000000e+00 : f32
    %8 = vector.broadcast %cst_3 : f32 to vector<8x8xf32>
    %9 = arith.mulf %4, %8 : vector<8x8xf32>
    %cst_4 = arith.constant 0x7F800000 : f32
    %10 = vector.broadcast %cst_4 : f32 to vector<8x128xf32>
    %c0_i32_5 = arith.constant 0 : i32
    %c128_i32 = arith.constant 128 : i32
    %11 = arith.muli %c0_i32_5, %c128_i32 : i32
    %12 = tpu.assume_multiple %11, 128 : i32
    %c0_6 = arith.constant 0 : index
    %c0_7 = arith.constant 0 : index
    %13 = arith.index_cast %12 : i32 to index
    %14 = vector.load %arg3[%c0_6, %c0_7, %13] : memref<1x8x128xf32, #tpu.memory_space<vmem>>, vector<1x8x128xf32>
    %15 = vector.shape_cast %14 : vector<1x8x128xf32> to vector<8x128xf32>
    %16 = arith.mulf %15, %15 : vector<8x128xf32>
    %cst_8 = arith.constant dense<0.000000e+00> : vector<128xf32>
    %17 = vector.multi_reduction <add>, %16, %cst_8 [0] : vector<8x128xf32> to vector<128xf32>
    %18 = vector.shape_cast %17 : vector<128xf32> to vector<1x128xf32>
    %cst_9 = arith.constant dense<0.000000e+00> : vector<8x128xf32>
    %19 = tpu.matmul %9, %15, %cst_9 {dimension_numbers = #tpu.dot_dimension_numbers<[1], [0], [0], [1], [0, 0, 1, 1], [], []>, precision = #tpu.contract_precision<fp32>} : vector<8x8xf32>, vector<8x128xf32>, vector<8x128xf32> -> vector<8x128xf32>
    %20 = vector.broadcast %7 : vector<8x1xf32> to vector<8x128xf32>
    %21 = vector.broadcast %18 : vector<1x128xf32> to vector<8x128xf32>
    %22 = arith.addf %20, %21 : vector<8x128xf32>
    %23 = arith.addf %22, %19 : vector<8x128xf32>
    %cst_10 = arith.constant dense<0x7F800000> : vector<128xf32>
    %24 = vector.multi_reduction <minimumf>, %23, %cst_10 [0] : vector<8x128xf32> to vector<128xf32>
    %25 = vector.shape_cast %24 : vector<128xf32> to vector<1x128xf32>
    %c0_11 = arith.constant 0 : index
    %26 = arith.index_cast %12 : i32 to index
    %27 = vector.load %arg5[%c0_11, %26] : memref<1x128xf32, #tpu.memory_space<vmem>>, vector<1x128xf32>
    %28 = arith.minimumf %27, %25 : vector<1x128xf32>
    %c0_12 = arith.constant 0 : index
    %29 = arith.index_cast %12 : i32 to index
    %30 = vector.load %arg5[%c0_12, %29] : memref<1x128xf32, #tpu.memory_space<vmem>>, vector<1x128xf32>
    tpu.vector_store %arg5[%c0_12, %29], %28 {strides = array<i32>} : memref<1x128xf32, #tpu.memory_space<vmem>>, vector<1x128xf32>,
    %31 = arith.minimumf %10, %23 : vector<8x128xf32>
    %c1_i32 = arith.constant 1 : i32
    %cst_13 = arith.constant dense<0x7F800000> : vector<8xf32>
    %32 = vector.multi_reduction <minimumf>, %31, %cst_13 [1] : vector<8x128xf32> to vector<8xf32>
    %33 = vector.shape_cast %32 : vector<8xf32> to vector<8x1xf32>
    %cst_14 = arith.constant 0.000000e+00 : f32
    %34 = vector.broadcast %cst_14 : f32 to vector<8x1xf32>
    %35 = arith.maximumf %33, %34 : vector<8x1xf32>
    %c0_15 = arith.constant 0 : index
    %c0_16 = arith.constant 0 : index
    %36 = vector.load %arg6[%c0_15, %c0_16] : memref<1x1xf32, #tpu.memory_space<vmem>>, vector<1x1xf32>
    %cst_17 = arith.constant dense<0.000000e+00> : vector<1xf32>
    %37 = vector.multi_reduction <add>, %35, %cst_17 [0] : vector<8x1xf32> to vector<1xf32>
    %38 = vector.shape_cast %37 : vector<1xf32> to vector<1x1xf32>
    %39 = arith.addf %36, %38 : vector<1x1xf32>
    %c0_18 = arith.constant 0 : index
    %c0_19 = arith.constant 0 : index
    %40 = vector.load %arg6[%c0_18, %c0_19] : memref<1x1xf32, #tpu.memory_space<vmem>>, vector<1x1xf32>
    tpu.vector_store %arg6[%c0_18, %c0_19], %39 {strides = array<i32>} : memref<1x1xf32, #tpu.memory_space<vmem>>, vector<1x1xf32>,
    %c0_i32_20 = arith.constant 0 : i32
    %41 = arith.cmpi eq, %arg1, %c0_i32_20 : i32
    %42 = arith.extui %41 : i1 to i32
    %c0_i32_21 = arith.constant 0 : i32
    %43 = arith.cmpi ne, %42, %c0_i32_21 : i32
    scf.if %43 {
      %c0_22 = arith.constant 0 : index
      %c0_23 = arith.constant 0 : index
      %44 = vector.load %arg5[%c0_22, %c0_23] : memref<1x128xf32, #tpu.memory_space<vmem>>, vector<1x128xf32>
      %cst_24 = arith.constant 0.000000e+00 : f32
      %45 = vector.broadcast %cst_24 : f32 to vector<1x128xf32>
      %46 = arith.maximumf %44, %45 : vector<1x128xf32>
      %47 = tpu.iota {dimensions = array<i32: 1>} : vector<1x128xi32>
      %c16_i32 = arith.constant 16 : i32
      %48 = vector.broadcast %c16_i32 : i32 to vector<1x128xi32>
      %49 = arith.cmpi slt, %47, %48 : vector<1x128xi32>
      %cst_25 = arith.constant 0.000000e+00 : f32
      %50 = vector.broadcast %cst_25 : f32 to vector<1x128xf32>
      %51 = arith.select %49, %46, %50 : vector<1x128xi1>, vector<1x128xf32>
      %cst_26 = arith.constant dense<0.000000e+00> : vector<1xf32>
      %52 = vector.multi_reduction <add>, %51, %cst_26 [1] : vector<1x128xf32> to vector<1xf32>
      %53 = vector.shape_cast %52 : vector<1xf32> to vector<1x1xf32>
      %c0_27 = arith.constant 0 : index
      %c0_28 = arith.constant 0 : index
      %54 = vector.load %arg6[%c0_27, %c0_28] : memref<1x1xf32, #tpu.memory_space<vmem>>, vector<1x1xf32>
      %cst_29 = arith.constant 1.250000e-01 : f32
      %55 = vector.broadcast %cst_29 : f32 to vector<1x1xf32>
      %56 = arith.mulf %54, %55 : vector<1x1xf32>
      %cst_30 = arith.constant 6.250000e-02 : f32
      %57 = vector.broadcast %cst_30 : f32 to vector<1x1xf32>
      %58 = arith.mulf %53, %57 : vector<1x1xf32>
      %59 = arith.addf %56, %58 : vector<1x1xf32>
      %60 = vector.shape_cast %59 : vector<1x1xf32> to vector<1x1x1xf32>
      %c0_31 = arith.constant 0 : index
      %c0_32 = arith.constant 0 : index
      %c0_33 = arith.constant 0 : index
      %61 = vector.load %arg4[%c0_31, %c0_32, %c0_33] : memref<1x1x1xf32, #tpu.memory_space<vmem>>, vector<1x1x1xf32>
      tpu.vector_store %arg4[%c0_31, %c0_32, %c0_33], %60 {strides = array<i32>} : memref<1x1x1xf32, #tpu.memory_space<vmem>>, vector<1x1x1xf32>,
    } else {
    }
    return
  }
  func.func @transform_0(%arg0: i32, %arg1: i32) -> (i32, i32, i32) {
    %c0_i32 = arith.constant 0 : i32
    %c0_i32_0 = arith.constant 0 : i32
    return %arg0, %arg1, %c0_i32 : i32, i32, i32
  }
  func.func @transform_1(%arg0: i32, %arg1: i32) -> (i32, i32, i32) {
    %c0_i32 = arith.constant 0 : i32
    %c0_i32_0 = arith.constant 0 : i32
    %c0_i32_1 = arith.constant 0 : i32
    return %arg0, %c0_i32, %c0_i32_0 : i32, i32, i32
  }
  func.func @transform_2(%arg0: i32, %arg1: i32) -> (i32, i32, i32) {
    %c0_i32 = arith.constant 0 : i32
    %c0_i32_0 = arith.constant 0 : i32
    %c0_i32_1 = arith.constant 0 : i32
    return %arg0, %c0_i32, %c0_i32_0 : i32, i32, i32
  }
}

</mosaic_0001>

<llo_original>
// kernel: tpu_custom_call.1
$region0: #{tpu_custom_call.1}
  #allocation0 [shape = 'u32[]', space=smem, size = 0x4, offset = 0x4, fixed_abs, tag = 'smem constant byte address 0x4 - core index']
  #allocation1 [shape = 'u32[72,128]{1,0:T(1,128)}', space=vmem, size = 0x9000, scoped, tag = 'internal scratch']
  #allocation2 [shape = 'f32[1,128]{1,0:T(1,128)}', space=vmem, size = 0x200, scoped, tag = 'scratch operand']
  #allocation3 [shape = 'f32[1,1]{1,0:T(1,128)}', space=vmem, size = 0x200, scoped, tag = 'scratch operand']
  %s0 = inlined_call_operand.hbm [shape: f32[2,8,8], index: 0, kind: input, shape index: {}]
  %s1 = inlined_call_operand.hbm [shape: f32[2,8,128], index: 1, kind: input, shape index: {}]
  %s2 = inlined_call_operand.vmem [shape: f32[2,1,1], index: 2, kind: output, shape index: {}]
  %s3 = sld [smem:[#allocation0]]
  $region57: #{tpu_custom_call.1} parent=0
    _
  %s5 = ssub.s32 1, %s3
  %s6 = scalar_select 0, %s5, %s3
  $region1: #{tpu_custom_call.1} parent=0
    #allocation4 [shape = 'u8[8192]{0}', space=vmem, size = 0x2000, scoped, tag = 'input window, operand 0']
    #allocation5 [shape = 's32[2]{0}', space=sflag, size = 0x8, scoped, tag = 'scoped memory for tpu_custom_call.1']
    #allocation6 [shape = 'u8[8192]{0}', space=vmem, size = 0x2000, scoped, tag = 'input window, operand 1']
    #allocation7 [shape = 's32[2]{0}', space=sflag, size = 0x8, scoped, tag = 'scoped memory for tpu_custom_call.1']
    %7 = vsyncpa [#allocation5], 0
    %s8 = scalar_lea.sflag [#allocation5], 1
    %9 = vsyncpa %s8, 0
    %10 = vsyncpa [#allocation7], 0
    %s11 = scalar_lea.sflag [#allocation7], 1
    %12 = vsyncpa %s11, 0
    loop: start=0, step=1, limit=4
    $region2: #{tpu_custom_call.1} parent=1 // loop_pre_header
      _
    $region3: #{tpu_custom_call.1} parent=1 // loop_header
      %s14 = sphi 0, %s18
      %p15 = scmp.ge.s32.totalorder %s14, 4
      %s21 = sphi 0, %s33
      %s22 = sphi 0, %s29
      %s23 = sphi 0, %s21
      %s24 = sphi 0, %s22
      %s25 = sphi 0, %s23
      %s26 = sphi 0, %s24
      %s38 = sphi 0, %s40
      %s41 = sphi 0, %s38
      %s42 = sphi 0, %s41
      %s58 = sphi 0, %s42
      %s64 = sphi 0, %s66
      %s67 = sphi 0, %s64
      %s68 = sphi 0, %s67
      %s84 = sphi 0, %s68
      %s90 = sphi 0, %s92
      %s93 = sphi 0, %s90
      %s94 = sphi 0, %s93
      %s110 = sphi 0, %s94
    $region4: #{tpu_custom_call.1} parent=1 // loop_header_branch
      %17 = sbr.rel (%p15) target = $region8
    $region5: #{tpu_custom_call.1} parent=1 // loop_body
      %s19 = ssub.s32 %s14, 1
      %s20 = ssub.s32 %s14, 2
      %s27 = sadd.s32 1, %s22
      %p28 = scmp.ge.s32.totalorder %s27, 1
      %s29 = scalar_select %p28, 0, %s27
      %s30 = sadd.s32 1, %s21
      %s31 = scalar_select %p28, %s30, %s21
      %p32 = scmp.ge.s32.totalorder %s31, 2
      %s33 = scalar_select %p32, 0, %s31
      %s34 = ssub.s32 %s21, %s33
      %s35 = ssub.s32 %s22, %s29
      %s36 = sor.u32 %s34, %s35
      %p37 = scmp.eq.s32.totalorder %s36, 0
      %s39 = sadd.s32 %s38, 1
      %s40 = scalar_select %p37, %s38, %s39
      %p43 = pneg %p37
      %p44 = scmp.eq.s32.totalorder %s14, 1
      %p45 = por %p43, %p44
      %p46 = scmp.ne.s32.totalorder %s38, %s41
      %p47 = scmp.eq.s32.totalorder %s14, 0
      %p48 = por %p46, %p47
      %p49 = scmp.ne.s32.totalorder %s38, %s41
      %p50 = scmp.eq.s32.totalorder %s19, 1
      %p51 = por %p49, %p50
      %p52 = scmp.ne.s32.totalorder %s41, %s42
      %p53 = scmp.eq.s32.totalorder %s19, 0
      %p54 = por %p52, %p53
      %p55 = scmp.ne.s32.totalorder %s41, %s42
      %p56 = scmp.eq.s32.totalorder %s20, 1
      %p57 = por %p55, %p56
      %p59 = scmp.ne.s32.totalorder %s42, %s58
      %p60 = scmp.eq.s32.totalorder %s20, 0
      %p61 = por %p59, %p60
      %s62 = ssub.s32 %s21, %s33
      %p63 = scmp.eq.s32.totalorder %s62, 0
      %s65 = sadd.s32 %s64, 1
      %s66 = scalar_select %p63, %s64, %s65
      %p69 = pneg %p63
      %p70 = scmp.eq.s32.totalorder %s14, 1
      %p71 = por %p69, %p70
      %p72 = scmp.ne.s32.totalorder %s64, %s67
      %p73 = scmp.eq.s32.totalorder %s14, 0
      %p74 = por %p72, %p73
      %p75 = scmp.ne.s32.totalorder %s64, %s67
      %p76 = scmp.eq.s32.totalorder %s19, 1
      %p77 = por %p75, %p76
      %p78 = scmp.ne.s32.totalorder %s67, %s68
      %p79 = scmp.eq.s32.totalorder %s19, 0
      %p80 = por %p78, %p79
      %p81 = scmp.ne.s32.totalorder %s67, %s68
      %p82 = scmp.eq.s32.totalorder %s20, 1
      %p83 = por %p81, %p82
      %p85 = scmp.ne.s32.totalorder %s68, %s84
      %p86 = scmp.eq.s32.totalorder %s20, 0
      %p87 = por %p85, %p86
      %s88 = ssub.s32 %s21, %s33
      %p89 = scmp.eq.s32.totalorder %s88, 0
      %s91 = sadd.s32 %s90, 1
      %s92 = scalar_select %p89, %s90, %s91
      %p95 = pneg %p89
      %p96 = scmp.eq.s32.totalorder %s14, 1
      %p97 = por %p95, %p96
      %p98 = scmp.ne.s32.totalorder %s90, %s93
      %p99 = scmp.eq.s32.totalorder %s14, 0
      %p100 = por %p98, %p99
      %p101 = scmp.ne.s32.totalorder %s90, %s93
      %p102 = scmp.eq.s32.totalorder %s19, 1
      %p103 = por %p101, %p102
      %p104 = scmp.ne.s32.totalorder %s93, %s94
      %p105 = scmp.eq.s32.totalorder %s19, 0
      %p106 = por %p104, %p105
      %p107 = scmp.ne.s32.totalorder %s93, %s94
      %p108 = scmp.eq.s32.totalorder %s20, 1
      %p109 = por %p107, %p108
      %p111 = scmp.ne.s32.totalorder %s94, %s110
      %p112 = scmp.eq.s32.totalorder %s20, 0
      %p113 = por %p111, %p112
      %p114 = scmp.le.s32.totalorder 1, %s14
      %p115 = scmp.lt.s32.totalorder %s14, 3
      %p116 = pnand %p114, %p115
      %p117 = pneg %p116
      // Predicated region
      $region9: #{tpu_custom_call.1} parent=5 // pred_check
        _
      $region10: #{tpu_custom_call.1} parent=5 // pred_check_branch
        %119 = sbr.rel (%p116) target = $region12
      $region11: #{tpu_custom_call.1} parent=5 // pred_region
        %s120 = ssub.s32 %s14, 1
      $region12: #{tpu_custom_call.1} parent=5 // pred_fallthru
        _
      %p121 = scmp.lt.s32.totalorder %s14, 2
      // Predicated region
      $region13: #{tpu_custom_call.1} parent=5 // pred_check
        %p122 = pneg %p121
      $region14: #{tpu_custom_call.1} parent=5 // pred_check_branch
        %124 = sbr.rel (%p122) target = $region16
      $region15: #{tpu_custom_call.1} parent=5 // pred_region
        // Predicated region
        $region17: #{tpu_custom_call.1} parent=15 // pred_check
          %p125 = pneg %p48
        $region18: #{tpu_custom_call.1} parent=15 // pred_check_branch
          %127 = sbr.rel (%p125) target = $region20
        $region19: #{tpu_custom_call.1} parent=15 // pred_region
          %s128 = sand.u32 %s38, 1
          %s129 = scalar_lea.sflag [#allocation5], %s128
          %s130 = sand.u32 %s38, 1
          %s131 = smul.addr %s130, 8
          %s132 = scalar_lea.vmem [#allocation4], %s131
          %134 = vsyncadd %s129, 0
          %s135 = sadd.s32 %s22, %s21
          %s136 = smul.addr %s135, 8
          %s137 = scalar_lea.hbm %s0, %s136
          %s139 = sshll.u32 %s137, 4
          %s140 = int_to_ptr.hbm [resolvable:$true] %s139
          %s141 = sshll.u32 %s132, 4
          %s142 = int_to_ptr.vmem [resolvable:$true] %s141
          %144 = dma.hbm_to_vmem [thread:$0]  %s140, 128, %s142, %s129
        $region20: #{tpu_custom_call.1} parent=15 // pred_fallthru
          _
        // Predicated region
        $region21: #{tpu_custom_call.1} parent=15 // pred_check
          %p145 = pneg %p74
        $region22: #{tpu_custom_call.1} parent=15 // pred_check_branch
          %147 = sbr.rel (%p145) target = $region24
        $region23: #{tpu_custom_call.1} parent=15 // pred_region
          %s148 = sand.u32 %s64, 1
          %s149 = scalar_lea.sflag [#allocation7], %s148
          %s150 = sand.u32 %s64, 1
          %s151 = smul.addr %s150, 8
          %s152 = scalar_lea.vmem [#allocation6], %s151
          %154 = vsyncadd %s149, 0
          %s155 = smul.addr %s21, 8
          %s156 = scalar_lea.hbm %s1, %s155
          %s158 = sshll.u32 %s156, 4
          %s159 = int_to_ptr.hbm [resolvable:$true] %s158
          %s160 = sshll.u32 %s152, 4
          %s161 = int_to_ptr.vmem [resolvable:$true] %s160
          %163 = dma.hbm_to_vmem [thread:$0]  %s159, 128, %s161, %s149
        $region24: #{tpu_custom_call.1} parent=15 // pred_fallthru
          _
      $region16: #{tpu_custom_call.1} parent=5 // pred_fallthru
        _
      %p164 = scmp.le.s32.totalorder 1, %s14
      %p165 = scmp.lt.s32.totalorder %s14, 3
      %p166 = pnand %p164, %p165
      %p167 = pneg %p166
      // Predicated region
      $region25: #{tpu_custom_call.1} parent=5 // pred_check
        _
      $region26: #{tpu_custom_call.1} parent=5 // pred_check_branch
        %169 = sbr.rel (%p166) target = $region28
      $region27: #{tpu_custom_call.1} parent=5 // pred_region
        %s170 = ssub.s32 %s14, 1
        %s171 = sand.u32 %s41, 1
        %s172 = scalar_lea.sflag [#allocation5], %s171
        %s173 = sand.u32 %s41, 1
        %s174 = smul.addr %s173, 8
        %s175 = scalar_lea.vmem [#allocation4], %s174
        // Predicated region
        $region29: #{tpu_custom_call.1} parent=27 // pred_check
          %p176 = pneg %p54
        $region30: #{tpu_custom_call.1} parent=27 // pred_check_branch
          %178 = sbr.rel (%p176) target = $region32
        $region31: #{tpu_custom_call.1} parent=27 // pred_region
          %180 = dma.done %s172, 128
        $region32: #{tpu_custom_call.1} parent=27 // pred_fallthru
          _
        %s181 = sand.u32 %s67, 1
        %s182 = scalar_lea.sflag [#allocation7], %s181
        %s183 = sand.u32 %s67, 1
        %s184 = smul.addr %s183, 8
        %s185 = scalar_lea.vmem [#allocation6], %s184
        // Predicated region
        $region33: #{tpu_custom_call.1} parent=27 // pred_check
          %p186 = pneg %p80
        $region34: #{tpu_custom_call.1} parent=27 // pred_check_branch
          %188 = sbr.rel (%p186) target = $region36
        $region35: #{tpu_custom_call.1} parent=27 // pred_region
          %190 = dma.done %s182, 128
        $region36: #{tpu_custom_call.1} parent=27 // pred_fallthru
          _
        %s191 = sand.u32 %s41, 1
        %s192 = scalar_lea.sflag [#allocation5], %s191
        %s193 = sand.u32 %s41, 1
        %s194 = smul.addr %s193, 8
        %s195 = scalar_lea.vmem [#allocation4], %s194
        %p196 = pneg %p54
        %p197 = pneg %p51
        %s198 = sand.u32 %s67, 1
        %s199 = scalar_lea.sflag [#allocation7], %s198
        %s200 = sand.u32 %s67, 1
        %s201 = smul.addr %s200, 8
        %s202 = scalar_lea.vmem [#allocation6], %s201
        %p203 = pneg %p80
        %p204 = pneg %p77
        %p205 = pneg %p106
        %p206 = pneg %p103
        %p207 = scmp.lt.s32.totalorder %s23, 1
        %s208 = scalar_select %p207, %s23, 1
        %s209 = scalar_lea.vmem %s2, %s208
        %p210 = scmp.lt.s32.totalorder %s23, 1
        %s211 = scalar_select %p210, %s23, 1
        %s212 = scalar_lea.vmem %s2, %s211
        %p213 = scmp.eq.s32.totalorder %s24, 0
        // Predicated region
        $region37: #{tpu_custom_call.1} parent=27 // pred_check
          %p214 = pneg %p213
        $region38: #{tpu_custom_call.1} parent=27 // pred_check_branch
          %216 = sbr.rel (%p214) target = $region40
        $region39: #{tpu_custom_call.1} parent=27 // pred_region
          %vm217 = vcmask 0
          %218 = vst.msk [vmem:[#allocation3] sm:$0x1] %vm217, 0.0
          %219 = vst [vmem:[#allocation2] sm:$0x1] inf
        $region40: #{tpu_custom_call.1} parent=27 // pred_fallthru
          _
        %v220 = vld [vmem:[%s175] sm:$0xff]
        %v221 = vmul.f32 %v220, %v220
        %vm222 = vcmask 64512
        %v223 = vsel %vm222, %v221, 0.0
        %224 = vadd.xlane.f32.xlu0 %v223
        %v225 = vpop.xlane.xlu0 %224
        %v226 = vmul.f32 %v220, -2.0
        %v227 = vld [vmem:[%s185] sm:$0xff]
        %v228 = vmul.f32 %v227, %v227
        %v229 = vrot.slane %v228, 4
        %v230 = vadd.f32 %v228, %v229
        %v231 = vrot.slane %v230, 2
        %v232 = vadd.f32 %v230, %v231
        %v233 = vrot.slane %v232, 1
        %v234 = vadd.f32 %v232, %v233
        %v236 = vsel %vm222, %v226, 0
        %238 = vmatpush.msra.mxu0 0.0
        %239 = vmatpush.msra.mxu0 0.0
        %240 = vmatpush.msra.mxu0 0.0
        %241 = vmatpush.msra.mxu0 0.0
        %242 = vmatpush.msra.mxu0 0.0
        %243 = vmatpush.msra.mxu0 0.0
        %244 = vmatpush.msra.mxu0 0.0
        %245 = vmatpush.msra.mxu0 0.0
        %246 = vmatpush.msra.mxu0 0.0
        %247 = vmatpush.msra.mxu0 0.0
        %248 = vmatpush.msra.mxu0 0.0
        %249 = vmatpush.msra.mxu0 0.0
        %250 = vmatpush.msra.mxu0 0.0
        %251 = vmatpush.msra.mxu0 0.0
        %252 = vmatpush.msra.mxu0 0.0
        %v253 = vand.u32 %v227, 4294901760
        %254 = vmatpush.msra.mxu0 %v253
        %v255 = vand.u32 %v236, 4294901760
        %v256 = vsub.f32 %v236, %v255
        %v257 = vand.u32 %v256, 4294901760
        %v258 = vsub.f32 %v256, %v257
        %v259 = vand.u32 %v258, 4294901760
        %260 = vmatmul.f32.gmra.mxu0 %v259
        %v261 = vpop.f32.mrf.mxu0
        %v262 = vadd.f32 0.0, %v261
        %263 = vdwg.mxu0
        %264 = vmatpush.msra.mxu0 0.0
        %265 = vmatpush.msra.mxu0 0.0
        %266 = vmatpush.msra.mxu0 0.0
        %267 = vmatpush.msra.mxu0 0.0
        %268 = vmatpush.msra.mxu0 0.0
        %269 = vmatpush.msra.mxu0 0.0
        %270 = vmatpush.msra.mxu0 0.0
        %271 = vmatpush.msra.mxu0 0.0
        %272 = vmatpush.msra.mxu0 0.0
        %273 = vmatpush.msra.mxu0 0.0
        %274 = vmatpush.msra.mxu0 0.0
        %275 = vmatpush.msra.mxu0 0.0
        %276 = vmatpush.msra.mxu0 0.0
        %277 = vmatpush.msra.mxu0 0.0
        %278 = vmatpush.msra.mxu0 0.0
        %v279 = vand.u32 %v227, 4294901760
        %v280 = vsub.f32 %v227, %v279
        %v281 = vand.u32 %v280, 4294901760
        %v282 = vsub.f32 %v280, %v281
        %v283 = vand.u32 %v282, 4294901760
        %284 = vmatpush.msra.mxu0 %v283
        %v285 = vand.u32 %v236, 4294901760
        %286 = vmatmul.f32.gmra.mxu0 %v285
        %v287 = vpop.f32.mrf.mxu0
        %v288 = vadd.f32 %v262, %v287
        %289 = vdwg.mxu0
        %290 = vmatpush.msra.mxu0 0.0
        %291 = vmatpush.msra.mxu0 0.0
        %292 = vmatpush.msra.mxu0 0.0
        %293 = vmatpush.msra.mxu0 0.0
        %294 = vmatpush.msra.mxu0 0.0
        %295 = vmatpush.msra.mxu0 0.0
        %296 = vmatpush.msra.mxu0 0.0
        %297 = vmatpush.msra.mxu0 0.0
        %298 = vmatpush.msra.mxu0 0.0
        %299 = vmatpush.msra.mxu0 0.0
        %300 = vmatpush.msra.mxu0 0.0
        %301 = vmatpush.msra.mxu0 0.0
        %302 = vmatpush.msra.mxu0 0.0
        %303 = vmatpush.msra.mxu0 0.0
        %304 = vmatpush.msra.mxu0 0.0
        %v305 = vand.u32 %v227, 4294901760
        %v306 = vsub.f32 %v227, %v305
        %307 = vmatpush.msra.mxu0 %v306
        %v308 = vand.u32 %v236, 4294901760
        %v309 = vsub.f32 %v236, %v308
        %310 = vmatmul.f32.gmra.mxu0 %v309
        %v311 = vpop.f32.mrf.mxu0
        %v312 = vadd.f32 %v288, %v311
        %313 = vdwg.mxu0
        %314 = vmatpush.msra.mxu0 0.0
        %315 = vmatpush.msra.mxu0 0.0
        %316 = vmatpush.msra.mxu0 0.0
        %317 = vmatpush.msra.mxu0 0.0
        %318 = vmatpush.msra.mxu0 0.0
        %319 = vmatpush.msra.mxu0 0.0
        %320 = vmatpush.msra.mxu0 0.0
        %321 = vmatpush.msra.mxu0 0.0
        %322 = vmatpush.msra.mxu0 0.0
        %323 = vmatpush.msra.mxu0 0.0
        %324 = vmatpush.msra.mxu0 0.0
        %325 = vmatpush.msra.mxu0 0.0
        %326 = vmatpush.msra.mxu0 0.0
        %327 = vmatpush.msra.mxu0 0.0
        %328 = vmatpush.msra.mxu0 0.0
        %v329 = vand.u32 %v227, 4294901760
        %330 = vmatpush.msra.mxu0 %v329
        %v331 = vand.u32 %v236, 4294901760
        %v332 = vsub.f32 %v236, %v331
        %v333 = vand.u32 %v332, 4294901760
        %334 = vmatmul.f32.gmra.mxu0 %v333
        %v335 = vpop.f32.mrf.mxu0
        %v336 = vadd.f32 %v312, %v335
        %337 = vdwg.mxu0
        %338 = vmatpush.msra.mxu0 0.0
        %339 = vmatpush.msra.mxu0 0.0
        %340 = vmatpush.msra.mxu0 0.0
        %341 = vmatpush.msra.mxu0 0.0
        %342 = vmatpush.msra.mxu0 0.0
        %343 = vmatpush.msra.mxu0 0.0
        %344 = vmatpush.msra.mxu0 0.0
        %345 = vmatpush.msra.mxu0 0.0
        %346 = vmatpush.msra.mxu0 0.0
        %347 = vmatpush.msra.mxu0 0.0
        %348 = vmatpush.msra.mxu0 0.0
        %349 = vmatpush.msra.mxu0 0.0
        %350 = vmatpush.msra.mxu0 0.0
        %351 = vmatpush.msra.mxu0 0.0
        %352 = vmatpush.msra.mxu0 0.0
        %v353 = vand.u32 %v227, 4294901760
        %v354 = vsub.f32 %v227, %v353
        %v355 = vand.u32 %v354, 4294901760
        %356 = vmatpush.msra.mxu0 %v355
        %v357 = vand.u32 %v236, 4294901760
        %358 = vmatmul.f32.gmra.mxu0 %v357
        %v359 = vpop.f32.mrf.mxu0
        %v360 = vadd.f32 %v336, %v359
        %361 = vdwg.mxu0
        %362 = vmatpush.msra.mxu0 0.0
        %363 = vmatpush.msra.mxu0 0.0
        %364 = vmatpush.msra.mxu0 0.0
        %365 = vmatpush.msra.mxu0 0.0
        %366 = vmatpush.msra.mxu0 0.0
        %367 = vmatpush.msra.mxu0 0.0
        %368 = vmatpush.msra.mxu0 0.0
        %369 = vmatpush.msra.mxu0 0.0
        %370 = vmatpush.msra.mxu0 0.0
        %371 = vmatpush.msra.mxu0 0.0
        %372 = vmatpush.msra.mxu0 0.0
        %373 = vmatpush.msra.mxu0 0.0
        %374 = vmatpush.msra.mxu0 0.0
        %375 = vmatpush.msra.mxu0 0.0
        %376 = vmatpush.msra.mxu0 0.0
        %v377 = vand.u32 %v227, 4294901760
        %378 = vmatpush.msra.mxu0 %v377
        %v379 = vand.u32 %v236, 4294901760
        %380 = vmatmul.f32.gmra.mxu0 %v379
        %v381 = vpop.f32.mrf.mxu0
        %v382 = vadd.f32 %v360, %v381
        %383 = vdwg.mxu0
        %v384 = vadd.f32 %v225, %v234
        %v385 = vadd.f32 %v384, %v382
        %v386 = vrot.slane %v385, 4
        %v387 = vmin.f32 %v385, %v386
        %v388 = vrot.slane %v387, 2
        %v389 = vmin.f32 %v387, %v388
        %v390 = vrot.slane %v389, 1
        %v391 = vmin.f32 %v389, %v390
        %v392 = vld [vmem:[#allocation2] sm:$0x1]
        %v393 = vmin.f32 %v392, %v391
        %394 = vst [vmem:[#allocation2] sm:$0x1] %v393
        %395 = vmin.xlane.f32.xlu0 %v385
        %v396 = vpop.xlane.xlu0 %395
        %v397 = vmax.f32 %v396, 0.0
        %v398 = vld [vmem:[#allocation3] sm:$0x1]
        %v399 = vrot.slane %v397, 4
        %v400 = vadd.f32 %v397, %v399
        %v401 = vrot.slane %v400, 2
        %v402 = vadd.f32 %v400, %v401
        %v403 = vrot.slane %v402, 1
        %v404 = vadd.f32 %v402, %v403
        %v405 = vadd.f32 %v398, %v404
        %vm406 = vcmask 0
        %407 = vst.msk [vmem:[#allocation3] sm:$0x1] %vm406, %v405
        // Predicated region
        $region41: #{tpu_custom_call.1} parent=27 // pred_check
          %p408 = pneg %p213
        $region42: #{tpu_custom_call.1} parent=27 // pred_check_branch
          %410 = sbr.rel (%p408) target = $region44
        $region43: #{tpu_custom_call.1} parent=27 // pred_region
          %v411 = vld [vmem:[#allocation2] sm:$0x1]
          %v412 = vmax.f32 %v411, 0.0
          %v413 = vlaneseq
          %v414 = vand.u32 %v413, 127
          %vm415 = vcmp.lt.s32.totalorder %v414, 16
          %v416 = vsel %vm415, %v412, 0.0
          %vm417 = vcmask 1040384
          %v418 = vsel %vm417, %v416, 0.0
          %419 = vadd.xlane.f32.xlu0 %v418
          %v420 = vpop.xlane.xlu0 %419
          %v421 = vld [vmem:[#allocation3] sm:$0x1]
          %v422 = vmul.f32 %v421, 0.125
          %v423 = vmul.f32 %v420, 0.0625
          %v424 = vadd.f32 %v422, %v423
          %425 = vst.msk [vmem:[%s212] sm:$0x1] %vm406, %v424
        $region44: #{tpu_custom_call.1} parent=27 // pred_fallthru
          _
        %p426 = scmp.lt.s32.totalorder %s23, 1
        %s427 = scalar_select %p426, %s23, 1
        %s428 = scalar_lea.vmem %s2, %s427
        // Predicated region
        $region45: #{tpu_custom_call.1} parent=27 // pred_check
          %p429 = pneg %p103
        $region46: #{tpu_custom_call.1} parent=27 // pred_check_branch
          %431 = sbr.rel (%p429) target = $region48
        $region47: #{tpu_custom_call.1} parent=27 // pred_region
          _
        $region48: #{tpu_custom_call.1} parent=27 // pred_fallthru
          _
      $region28: #{tpu_custom_call.1} parent=5 // pred_fallthru
        _
      %p432 = scmp.le.s32.totalorder 2, %s14
      // Predicated region
      $region49: #{tpu_custom_call.1} parent=5 // pred_check
        %p433 = pneg %p432
      $region50: #{tpu_custom_call.1} parent=5 // pred_check_branch
        %435 = sbr.rel (%p433) target = $region52
      $region51: #{tpu_custom_call.1} parent=5 // pred_region
        %s436 = ssub.s32 %s14, 2
        // Predicated region
        $region53: #{tpu_custom_call.1} parent=51 // pred_check
          %p437 = pneg %p109
        $region54: #{tpu_custom_call.1} parent=51 // pred_check_branch
          %439 = sbr.rel (%p437) target = $region56
        $region55: #{tpu_custom_call.1} parent=51 // pred_region
          %p440 = scmp.lt.s32.totalorder %s25, 1
          %s441 = scalar_select %p440, %s25, 1
          %s442 = scalar_lea.vmem %s2, %s441
        $region56: #{tpu_custom_call.1} parent=51 // pred_fallthru
          _
      $region52: #{tpu_custom_call.1} parent=5 // pred_fallthru
        _
    $region6: #{tpu_custom_call.1} parent=1 // loop_footer
      %s18 = sadd.s32 1, %s14
    $region7: #{tpu_custom_call.1} parent=1 // loop_footer_branch
      %13 = sbr.rel target = $region3
    $region8: #{tpu_custom_call.1} parent=1 // loop_exit
      _
    %443 = vsyncpa [#allocation5], 1
    %s444 = scalar_lea.sflag [#allocation5], 1
    %445 = vsyncpa %s444, 1
    %446 = vsyncpa [#allocation7], 1
    %s447 = scalar_lea.sflag [#allocation7], 1
    %448 = vsyncpa %s447, 1

</llo_original>
